<compile_context>
chip_gen: v6e
topology: v6e:2x2x1
jax: 0.10.0
libtpu: 0.0.40
codegen_flags: <defaults>
</compile_context>

<pallas_src>
import functools

import numpy as np
import jax
import jax.numpy as jnp
from jax import lax
from jax.experimental import pallas as pl
from jax.experimental.pallas import tpu as pltpu


# ----------------------------- parameter setup ------------------------------

def _round_up(x, m):
    return (x + m - 1) // m * m


def gaussian_kernel1d(size: int, sigma: float) -> np.ndarray:
    """Matches get_gaussian_kernel1d / _fspecial_gauss_1d (normalized)."""
    coords = np.arange(size, dtype=np.float32) - size // 2
    g = np.exp(-(coords ** 2) / (2.0 * sigma ** 2)).astype(np.float32)
    return (g / g.sum()).astype(np.float32)


def _gauss_band_h(g: np.ndarray, h_in: int, h_out_pad: int) -> np.ndarray:
    """(h_out_pad, h_in) left-matrix: row o -> sum_t g[t]*z[o+t]; pad rows = 0."""
    k = g.shape[0]
    h_out = h_in - k + 1
    m = np.zeros((h_out_pad, h_in), np.float32)
    for o in range(h_out):
        m[o, o:o + k] = g
    return m


def _gauss_band_w(g: np.ndarray, w_in: int) -> np.ndarray:
    """(w_in, w_out) right-matrix: col j -> sum_t g[t]*z[j+t]."""
    k = g.shape[0]
    w_out = w_in - k + 1
    m = np.zeros((w_in, w_out), np.float32)
    for j in range(w_out):
        m[j:j + k, j] = g
    return m


# --------------------------------- kernel -----------------------------------

def ssim_kernel(x_ref, y_ref, gh_ref, gw_ref, ssim_ref, cs_ref,
                *, hout, houtp, c1, c2, compensation):
    f32 = jnp.float32
    x = x_ref[0].astype(f32)                       # (Hs, B*Ws), lanes = (plane, w)
    y = y_ref[0].astype(f32)

    # Five statistic maps stacked along sublanes -> single operand per matmul.
    z = jnp.concatenate([x, y, x * x, y * y, x * y], axis=0)   # (5*Hs, B*Ws)

    # Matmul #1: Gaussian filter along H (block-diagonal over the 5 statistics).
    t = jnp.dot(gh_ref[...], z, preferred_element_type=f32)    # (5*Houtp, B*Ws)
    # Matmul #2: Gaussian filter along W (block-diagonal over the B planes).
    f = jnp.dot(t, gw_ref[...], preferred_element_type=f32)    # (5*Houtp, B*Wout)

    # 8-aligned static row slices (Houtp is a multiple of 8).
    mu1 = f[0 * houtp:1 * houtp]
    mu2 = f[1 * houtp:2 * houtp]
    sxx = f[2 * houtp:3 * houtp]
    syy = f[3 * houtp:4 * houtp]
    sxy = f[4 * houtp:5 * houtp]

    mu1_sq = mu1 * mu1
    mu2_sq = mu2 * mu2
    mu1_mu2 = mu1 * mu2

    sigma1_sq = sxx - mu1_sq
    sigma2_sq = syy - mu2_sq
    sigma12 = sxy - mu1_mu2
    if compensation != 1.0:                         # folded out when == 1.0
        sigma1_sq = compensation * sigma1_sq
        sigma2_sq = compensation * sigma2_sq
        sigma12 = compensation * sigma12

    sigma1_sq = jnp.maximum(sigma1_sq, 0.0)         # sigma[sigma < 0] = 0
    sigma2_sq = jnp.maximum(sigma2_sq, 0.0)

    cs_map = (2.0 * sigma12 + c2) / (sigma1_sq + sigma2_sq + c2)
    ssim_map = (2.0 * mu1_mu2 + c1) / (mu1_sq + mu2_sq + c1) * cs_map

    if houtp != hout:                               # mask padded (all-zero) H rows
        row = lax.broadcasted_iota(jnp.int32, ssim_map.shape, 0)
        valid = row < hout
        ssim_map = jnp.where(valid, ssim_map, 0.0)
        cs_map = jnp.where(valid, cs_map, 0.0)

    # One partial sum per grid step (no shared accumulator across steps/cores).
    ssim_ref[0] = jnp.sum(ssim_map, axis=(0, 1), keepdims=True)
    cs_ref[0] = jnp.sum(cs_map, axis=(0, 1), keepdims=True)


# -------------------------------- wrapper ------------------------------------

def ssim_pallas(X, Y, *, window_size=11, window_sigma=1.5, data_range=255.0,
                K=(0.01, 0.03), compensation=1.0, shave=4, full=False):
    """SSIM.forward with size_average=True, use_padding=False."""
    if X.ndim != 4 or X.shape != Y.shape:
        raise ValueError("Input images must be 4-d tensors of the same shape.")
    if shave:
        X = X[..., shave:-shave, shave:-shave]
        Y = Y[..., shave:-shave, shave:-shave]

    N, C, Hs, Ws = X.shape
    if Hs < window_size or Ws < window_size:
        raise ValueError("Image (after shave) must be at least window_size.")
    NC = N * C
    # Two grid steps when possible (v7x: one plane-group per TensorCore).
    G = 2 if (NC % 2 == 0 and NC >= 2) else 1
    B = NC // G

    # Lane-dense group layout (G, Hs, B*Ws); keep native dtype, cast in kernel.
    def regroup(A):
        return (A.reshape(G, B, Hs, Ws)
                 .transpose(0, 2, 1, 3)
                 .reshape(G, Hs, B * Ws))
    Xg = regroup(X)
    Yg = regroup(Y)

    g = gaussian_kernel1d(window_size, window_sigma)
    Hout = Hs - window_size + 1
    Wout = Ws - window_size + 1
    Houtp = _round_up(Hout, 8)     # pad filtered-H rows -> all slices 8-aligned

    gh5 = jnp.asarray(np.kron(np.eye(5, dtype=np.float32),
                              _gauss_band_h(g, Hs, Houtp)))   # (5*Houtp, 5*Hs)
    gwb = jnp.asarray(np.kron(np.eye(B, dtype=np.float32),
                              _gauss_band_w(g, Ws)))          # (B*Ws, B*Wout)

    K1, K2 = K
    C1 = (K1 * data_range) ** 2
    C2 = (K2 * data_range) ** 2

    kernel = functools.partial(ssim_kernel, hout=Hout, houtp=Houtp,
                               c1=float(C1), c2=float(C2),
                               compensation=float(compensation))

    ssim_parts, cs_parts = pl.pallas_call(
        kernel,
        out_shape=(jax.ShapeDtypeStruct((G, 1, 1), jnp.float32),
                   jax.ShapeDtypeStruct((G, 1, 1), jnp.float32)),
        grid_spec=pltpu.PrefetchScalarGridSpec(
            num_scalar_prefetch=0,
            grid=(G,),
            in_specs=[
                pl.BlockSpec((1, Hs, B * Ws), lambda i: (i, 0, 0)),
                pl.BlockSpec((1, Hs, B * Ws), lambda i: (i, 0, 0)),
                pl.BlockSpec((5 * Houtp, 5 * Hs), lambda i: (0, 0)),
                pl.BlockSpec((B * Ws, B * Wout), lambda i: (0, 0)),
            ],
            out_specs=[
                pl.BlockSpec((1, 1, 1), lambda i: (i, 0, 0)),
                pl.BlockSpec((1, 1, 1), lambda i: (i, 0, 0)),
            ],
        ),
        compiler_params=pltpu.CompilerParams(
            dimension_semantics=("parallel",)),
    )(Xg, Yg, gh5, gwb)

    n_elems = NC * Hout * Wout
    ssim_val = jnp.sum(ssim_parts) / n_elems     # ssim_map.mean()
    cs_val = jnp.sum(cs_parts) / n_elems         # cs_map.mean()
    if full:
        return ssim_val, cs_val
    return ssim_val


# ------------------------------ reference (JAX) ------------------------------

def ssim_reference(X, Y, *, window_size=11, window_sigma=1.5, data_range=255.0,
                   K=(0.01, 0.03), compensation=1.0, shave=4):
    if shave:
        X = X[..., shave:-shave, shave:-shave]
        Y = Y[..., shave:-shave, shave:-shave]
    N, C, Hs, Ws = X.shape
    g = gaussian_kernel1d(window_size, window_sigma)
    k = window_size

    def filt(z):  # valid separable gaussian filter, NCHW
        zw = sum(g[t] * z[..., :, t:t + Ws - k + 1] for t in range(k))  # along W
        zh = sum(g[t] * zw[..., t:t + Hs - k + 1, :] for t in range(k))  # along H
        return zh

    K1, K2 = K
    C1 = (K1 * data_range) ** 2
    C2 = (K2 * data_range) ** 2
    mu1, mu2 = filt(X), filt(Y)
    mu1_sq, mu2_sq, mu1_mu2 = mu1 ** 2, mu2 ** 2, mu1 * mu2
    s1 = jnp.maximum(compensation * (filt(X * X) - mu1_sq), 0.0)
    s2 = jnp.maximum(compensation * (filt(Y * Y) - mu2_sq), 0.0)
    s12 = compensation * (filt(X * Y) - mu1_mu2)
    cs_map = (2 * s12 + C2) / (s1 + s2 + C2)
    ssim_map = (2 * mu1_mu2 + C1) / (mu1_sq + mu2_sq + C1) * cs_map
    return ssim_map.mean()


# ---------------------------------- main -------------------------------------

if __name__ == "__main__":
    key = jax.random.PRNGKey(0)
    kx, ky = jax.random.split(key)
    # (N, C, H, W) in NCHW, pixel values in [0, 255] matching data_range=255.
    N, C, H, W = 2, 3, 32, 32
    X = jax.random.uniform(kx, (N, C, H, W), jnp.float32, 0.0, 255.0)
    Y = jnp.clip(X + 20.0 * jax.random.normal(ky, (N, C, H, W), jnp.float32),
                 0.0, 255.0)

    out = ssim_pallas(X, Y)
    out = jax.block_until_ready(out)

    ref = ssim_reference(X, Y)
    assert jnp.allclose(out, ref, rtol=1e-4, atol=1e-4), (out, ref)
    print("KERNEL_OK")
</pallas_src>

<mosaic_0001>
module attributes {stable_mosaic.version = 11 : i64} {
  func.func @ssim_kernel(%arg0: i32, %arg1: memref<1x24x72xf32, #tpu.memory_space<vmem>>, %arg2: memref<1x24x72xf32, #tpu.memory_space<vmem>>, %arg3: memref<80x120xf32, #tpu.memory_space<vmem>>, %arg4: memref<72x42xf32, #tpu.memory_space<vmem>>, %arg5: memref<1x1x1xf32, #tpu.memory_space<vmem>>, %arg6: memref<1x1x1xf32, #tpu.memory_space<vmem>>) attributes {dimension_semantics = [#tpu.dimension_semantics<parallel>], iteration_bounds = array<i64: 2>, scalar_prefetch = 0 : i64, scratch_operands = 0 : i64, tpu.core_type = #tpu.core_type<tc>, window_params = [{transform_indices = @transform_0, window_bounds = array<i64: 1, 24, 72>}, {transform_indices = @transform_1, window_bounds = array<i64: 1, 24, 72>}, {pipeline_mode = #tpu.pipeline_mode<synchronous>, transform_indices = @transform_2, window_bounds = array<i64: 80, 120>}, {pipeline_mode = #tpu.pipeline_mode<synchronous>, transform_indices = @transform_3, window_bounds = array<i64: 72, 42>}, {transform_indices = @transform_4, window_bounds = array<i64: 1, 1, 1>}, {transform_indices = @transform_5, window_bounds = array<i64: 1, 1, 1>}]} {
    %c0 = arith.constant 0 : index
    %c0_0 = arith.constant 0 : index
    %c0_1 = arith.constant 0 : index
    %0 = vector.load %arg1[%c0, %c0_0, %c0_1] : memref<1x24x72xf32, #tpu.memory_space<vmem>>, vector<1x24x72xf32>
    %1 = vector.shape_cast %0 : vector<1x24x72xf32> to vector<24x72xf32>
    %c0_2 = arith.constant 0 : index
    %c0_3 = arith.constant 0 : index
    %c0_4 = arith.constant 0 : index
    %2 = vector.load %arg2[%c0_2, %c0_3, %c0_4] : memref<1x24x72xf32, #tpu.memory_space<vmem>>, vector<1x24x72xf32>
    %3 = vector.shape_cast %2 : vector<1x24x72xf32> to vector<24x72xf32>
    %4 = arith.mulf %1, %1 : vector<24x72xf32>
    %5 = arith.mulf %3, %3 : vector<24x72xf32>
    %6 = arith.mulf %1, %3 : vector<24x72xf32>
    %7 = tpu.concatenate %1, %3, %4, %5, %6 in 0 : vector<24x72xf32>, vector<24x72xf32>, vector<24x72xf32>, vector<24x72xf32>, vector<24x72xf32> -> vector<120x72xf32>
    %c0_5 = arith.constant 0 : index
    %c0_6 = arith.constant 0 : index
    %8 = vector.load %arg3[%c0_5, %c0_6] : memref<80x120xf32, #tpu.memory_space<vmem>>, vector<80x120xf32>
    %cst = arith.constant dense<0.000000e+00> : vector<80x72xf32>
    %9 = tpu.matmul %8, %7, %cst {dimension_numbers = #tpu.dot_dimension_numbers<[1], [0], [0], [1], [0, 0, 1, 1], [], []>} : vector<80x120xf32>, vector<120x72xf32>, vector<80x72xf32> -> vector<80x72xf32>
    %c0_7 = arith.constant 0 : index
    %c0_8 = arith.constant 0 : index
    %10 = vector.load %arg4[%c0_7, %c0_8] : memref<72x42xf32, #tpu.memory_space<vmem>>, vector<72x42xf32>
    %cst_9 = arith.constant dense<0.000000e+00> : vector<80x42xf32>
    %11 = tpu.matmul %9, %10, %cst_9 {dimension_numbers = #tpu.dot_dimension_numbers<[1], [0], [0], [1], [0, 0, 1, 1], [], []>} : vector<80x72xf32>, vector<72x42xf32>, vector<80x42xf32> -> vector<80x42xf32>
    %12 = vector.extract_strided_slice %11 {offsets = [0, 0], sizes = [16, 42], strides = [1, 1]} : vector<80x42xf32> to vector<16x42xf32>
    %13 = vector.extract_strided_slice %11 {offsets = [16, 0], sizes = [16, 42], strides = [1, 1]} : vector<80x42xf32> to vector<16x42xf32>
    %14 = vector.extract_strided_slice %11 {offsets = [32, 0], sizes = [16, 42], strides = [1, 1]} : vector<80x42xf32> to vector<16x42xf32>
    %15 = vector.extract_strided_slice %11 {offsets = [48, 0], sizes = [16, 42], strides = [1, 1]} : vector<80x42xf32> to vector<16x42xf32>
    %16 = vector.extract_strided_slice %11 {offsets = [64, 0], sizes = [16, 42], strides = [1, 1]} : vector<80x42xf32> to vector<16x42xf32>
    %17 = arith.mulf %12, %12 : vector<16x42xf32>
    %18 = arith.mulf %13, %13 : vector<16x42xf32>
    %19 = arith.mulf %12, %13 : vector<16x42xf32>
    %20 = arith.subf %14, %17 : vector<16x42xf32>
    %21 = arith.subf %15, %18 : vector<16x42xf32>
    %22 = arith.subf %16, %19 : vector<16x42xf32>
    %cst_10 = arith.constant 0.000000e+00 : f32
    %23 = vector.broadcast %cst_10 : f32 to vector<16x42xf32>
    %24 = arith.maximumf %20, %23 : vector<16x42xf32>
    %cst_11 = arith.constant 0.000000e+00 : f32
    %25 = vector.broadcast %cst_11 : f32 to vector<16x42xf32>
    %26 = arith.maximumf %21, %25 : vector<16x42xf32>
    %cst_12 = arith.constant 2.000000e+00 : f32
    %27 = vector.broadcast %cst_12 : f32 to vector<16x42xf32>
    %28 = arith.mulf %27, %22 : vector<16x42xf32>
    %cst_13 = arith.constant 5.852250e+01 : f32
    %29 = vector.broadcast %cst_13 : f32 to vector<16x42xf32>
    %30 = arith.addf %28, %29 : vector<16x42xf32>
    %31 = arith.addf %24, %26 : vector<16x42xf32>
    %cst_14 = arith.constant 5.852250e+01 : f32
    %32 = vector.broadcast %cst_14 : f32 to vector<16x42xf32>
    %33 = arith.addf %31, %32 : vector<16x42xf32>
    %34 = arith.divf %30, %33 : vector<16x42xf32>
    %cst_15 = arith.constant 2.000000e+00 : f32
    %35 = vector.broadcast %cst_15 : f32 to vector<16x42xf32>
    %36 = arith.mulf %35, %19 : vector<16x42xf32>
    %cst_16 = arith.constant 6.502500e+00 : f32
    %37 = vector.broadcast %cst_16 : f32 to vector<16x42xf32>
    %38 = arith.addf %36, %37 : vector<16x42xf32>
    %39 = arith.addf %17, %18 : vector<16x42xf32>
    %cst_17 = arith.constant 6.502500e+00 : f32
    %40 = vector.broadcast %cst_17 : f32 to vector<16x42xf32>
    %41 = arith.addf %39, %40 : vector<16x42xf32>
    %42 = arith.divf %38, %41 : vector<16x42xf32>
    %43 = arith.mulf %42, %34 : vector<16x42xf32>
    %44 = tpu.iota {dimensions = array<i32: 0>} : vector<16x42xi32>
    %c14_i32 = arith.constant 14 : i32
    %45 = vector.broadcast %c14_i32 : i32 to vector<16x42xi32>
    %46 = arith.cmpi slt, %44, %45 : vector<16x42xi32>
    %cst_18 = arith.constant 0.000000e+00 : f32
    %47 = vector.broadcast %cst_18 : f32 to vector<16x42xf32>
    %48 = arith.select %46, %43, %47 : vector<16x42xi1>, vector<16x42xf32>
    %cst_19 = arith.constant 0.000000e+00 : f32
    %49 = vector.broadcast %cst_19 : f32 to vector<16x42xf32>
    %50 = arith.select %46, %34, %49 : vector<16x42xi1>, vector<16x42xf32>
    %51 = vector.shape_cast %48 : vector<16x42xf32> to vector<1x16x42xf32>
    %cst_20 = arith.constant dense<0.000000e+00> : vector<1xf32>
    %52 = vector.multi_reduction <add>, %51, %cst_20 [1, 2] : vector<1x16x42xf32> to vector<1xf32>
    %53 = vector.shape_cast %52 : vector<1xf32> to vector<1x1x1xf32>
    %54 = vector.extract %53[0, 0, 0] : f32 from vector<1x1x1xf32>
    %55 = vector.broadcast %54 : f32 to vector<1x1xf32>
    %c0_21 = arith.constant 0 : index
    %c0_22 = arith.constant 0 : index
    %c0_23 = arith.constant 0 : index
    %56 = vector.load %arg5[%c0_21, %c0_22, %c0_23] : memref<1x1x1xf32, #tpu.memory_space<vmem>>, vector<1x1x1xf32>
    %57 = vector.shape_cast %56 : vector<1x1x1xf32> to vector<1x1xf32>
    %58 = vector.shape_cast %55 : vector<1x1xf32> to vector<1x1x1xf32>
    tpu.vector_store %arg5[%c0_21, %c0_22, %c0_23], %58 {strides = array<i32>} : memref<1x1x1xf32, #tpu.memory_space<vmem>>, vector<1x1x1xf32>,
    %59 = vector.shape_cast %50 : vector<16x42xf32> to vector<1x16x42xf32>
    %cst_24 = arith.constant dense<0.000000e+00> : vector<1xf32>
    %60 = vector.multi_reduction <add>, %59, %cst_24 [1, 2] : vector<1x16x42xf32> to vector<1xf32>
    %61 = vector.shape_cast %60 : vector<1xf32> to vector<1x1x1xf32>
    %62 = vector.extract %61[0, 0, 0] : f32 from vector<1x1x1xf32>
    %63 = vector.broadcast %62 : f32 to vector<1x1xf32>
    %c0_25 = arith.constant 0 : index
    %c0_26 = arith.constant 0 : index
    %c0_27 = arith.constant 0 : index
    %64 = vector.load %arg6[%c0_25, %c0_26, %c0_27] : memref<1x1x1xf32, #tpu.memory_space<vmem>>, vector<1x1x1xf32>
    %65 = vector.shape_cast %64 : vector<1x1x1xf32> to vector<1x1xf32>
    %66 = vector.shape_cast %63 : vector<1x1xf32> to vector<1x1x1xf32>
    tpu.vector_store %arg6[%c0_25, %c0_26, %c0_27], %66 {strides = array<i32>} : memref<1x1x1xf32, #tpu.memory_space<vmem>>, vector<1x1x1xf32>,
    return
  }
  func.func @transform_0(%arg0: i32) -> (i32, i32, i32) {
    %c0_i32 = arith.constant 0 : i32
    %c0_i32_0 = arith.constant 0 : i32
    %c0_i32_1 = arith.constant 0 : i32
    return %arg0, %c0_i32, %c0_i32_0 : i32, i32, i32
  }
  func.func @transform_1(%arg0: i32) -> (i32, i32, i32) {
    %c0_i32 = arith.constant 0 : i32
    %c0_i32_0 = arith.constant 0 : i32
    %c0_i32_1 = arith.constant 0 : i32
    return %arg0, %c0_i32, %c0_i32_0 : i32, i32, i32
  }
  func.func @transform_2(%arg0: i32) -> (i32, i32) {
    %c0_i32 = arith.constant 0 : i32
    %c0_i32_0 = arith.constant 0 : i32
    %c0_i32_1 = arith.constant 0 : i32
    return %c0_i32, %c0_i32_0 : i32, i32
  }
  func.func @transform_3(%arg0: i32) -> (i32, i32) {
    %c0_i32 = arith.constant 0 : i32
    %c0_i32_0 = arith.constant 0 : i32
    %c0_i32_1 = arith.constant 0 : i32
    return %c0_i32, %c0_i32_0 : i32, i32
  }
  func.func @transform_4(%arg0: i32) -> (i32, i32, i32) {
    %c0_i32 = arith.constant 0 : i32
    %c0_i32_0 = arith.constant 0 : i32
    %c0_i32_1 = arith.constant 0 : i32
    return %arg0, %c0_i32, %c0_i32_0 : i32, i32, i32
  }
  func.func @transform_5(%arg0: i32) -> (i32, i32, i32) {
    %c0_i32 = arith.constant 0 : i32
    %c0_i32_0 = arith.constant 0 : i32
    %c0_i32_1 = arith.constant 0 : i32
    return %arg0, %c0_i32, %c0_i32_0 : i32, i32, i32
  }
}

</mosaic_0001>

<llo_original>
// kernel: tpu_custom_call.1
$region0: #{tpu_custom_call.1}
  #allocation0 [shape = 'u32[]', space=smem, size = 0x4, offset = 0x4, fixed_abs, tag = 'smem constant byte address 0x4 - core index']
  #allocation1 [shape = 'u32[144,128]{1,0:T(1,128)}', space=vmem, size = 0x12000, scoped, tag = 'internal scratch']
  %s0 = inlined_call_operand.hbm [shape: f32[2,24,72], index: 0, kind: input, shape index: {}]
  %s1 = inlined_call_operand.hbm [shape: f32[2,24,72], index: 1, kind: input, shape index: {}]
  %s2 = inlined_call_operand.vmem [shape: f32[80,120], index: 2, kind: input, shape index: {}]
  %s3 = inlined_call_operand.vmem [shape: f32[72,42], index: 3, kind: input, shape index: {}]
  %s4 = inlined_call_operand.vmem [shape: f32[2,1,1], index: 4, kind: output, shape index: {0}]
  %s5 = inlined_call_operand.vmem [shape: f32[2,1,1], index: 5, kind: output, shape index: {1}]
  %6 = xla_tuple %s4, %s5
  %s7 = sld [smem:[#allocation0]]
  $region65: #{tpu_custom_call.1} parent=0
    _
  %s9 = ssub.s32 1, %s7
  %s10 = scalar_select 0, %s9, %s7
  $region1: #{tpu_custom_call.1} parent=0
    #allocation2 [shape = 'u8[24576]{0}', space=vmem, size = 0x6000, scoped, tag = 'input window, operand 0']
    #allocation3 [shape = 's32[2]{0}', space=sflag, size = 0x8, scoped, tag = 'scoped memory for tpu_custom_call.1']
    #allocation4 [shape = 'u8[24576]{0}', space=vmem, size = 0x6000, scoped, tag = 'input window, operand 1']
    #allocation5 [shape = 's32[2]{0}', space=sflag, size = 0x8, scoped, tag = 'scoped memory for tpu_custom_call.1']
    %11 = vsyncpa [#allocation3], 0
    %s12 = scalar_lea.sflag [#allocation3], 1
    %13 = vsyncpa %s12, 0
    %14 = vsyncpa [#allocation5], 0
    %s15 = scalar_lea.sflag [#allocation5], 1
    %16 = vsyncpa %s15, 0
    loop: start=0, step=1, limit=4
    $region2: #{tpu_custom_call.1} parent=1 // loop_pre_header
      _
    $region3: #{tpu_custom_call.1} parent=1 // loop_header
      %s18 = sphi 0, %s22
      %p19 = scmp.ge.s32.totalorder %s18, 4
      %s28 = sphi 0, %s30
      %s31 = sphi 0, %s28
      %s32 = sphi 0, %s31
      %s48 = sphi 0, %s32
      %s54 = sphi 0, %s56
      %s57 = sphi 0, %s54
      %s58 = sphi 0, %s57
      %s74 = sphi 0, %s58
      %s78 = sphi 0, %s78
      %s80 = sphi 0, %s78
      %s81 = sphi 0, %s80
      %s95 = sphi 0, %s81
      %s99 = sphi 0, %s99
      %s101 = sphi 0, %s99
      %s102 = sphi 0, %s101
      %s116 = sphi 0, %s102
      %s122 = sphi 0, %s124
      %s125 = sphi 0, %s122
      %s126 = sphi 0, %s125
      %s142 = sphi 0, %s126
      %s148 = sphi 0, %s150
      %s151 = sphi 0, %s148
      %s152 = sphi 0, %s151
      %s168 = sphi 0, %s152
    $region4: #{tpu_custom_call.1} parent=1 // loop_header_branch
      %21 = sbr.rel (%p19) target = $region8
    $region5: #{tpu_custom_call.1} parent=1 // loop_body
      %s23 = ssub.s32 %s18, 1
      %s24 = ssub.s32 %s18, 2
      %s25 = sadd.s32 %s18, 1
      %s26 = ssub.s32 %s18, %s25
      %p27 = scmp.eq.s32.totalorder %s26, 0
      %s29 = sadd.s32 %s28, 1
      %s30 = scalar_select %p27, %s28, %s29
      %p33 = pneg %p27
      %p34 = scmp.eq.s32.totalorder %s18, 1
      %p35 = por %p33, %p34
      %p36 = scmp.ne.s32.totalorder %s28, %s31
      %p37 = scmp.eq.s32.totalorder %s18, 0
      %p38 = por %p36, %p37
      %p39 = scmp.ne.s32.totalorder %s28, %s31
      %p40 = scmp.eq.s32.totalorder %s23, 1
      %p41 = por %p39, %p40
      %p42 = scmp.ne.s32.totalorder %s31, %s32
      %p43 = scmp.eq.s32.totalorder %s23, 0
      %p44 = por %p42, %p43
      %p45 = scmp.ne.s32.totalorder %s31, %s32
      %p46 = scmp.eq.s32.totalorder %s24, 1
      %p47 = por %p45, %p46
      %p49 = scmp.ne.s32.totalorder %s32, %s48
      %p50 = scmp.eq.s32.totalorder %s24, 0
      %p51 = por %p49, %p50
      %s52 = ssub.s32 %s18, %s25
      %p53 = scmp.eq.s32.totalorder %s52, 0
      %s55 = sadd.s32 %s54, 1
      %s56 = scalar_select %p53, %s54, %s55
      %p59 = pneg %p53
      %p60 = scmp.eq.s32.totalorder %s18, 1
      %p61 = por %p59, %p60
      %p62 = scmp.ne.s32.totalorder %s54, %s57
      %p63 = scmp.eq.s32.totalorder %s18, 0
      %p64 = por %p62, %p63
      %p65 = scmp.ne.s32.totalorder %s54, %s57
      %p66 = scmp.eq.s32.totalorder %s23, 1
      %p67 = por %p65, %p66
      %p68 = scmp.ne.s32.totalorder %s57, %s58
      %p69 = scmp.eq.s32.totalorder %s23, 0
      %p70 = por %p68, %p69
      %p71 = scmp.ne.s32.totalorder %s57, %s58
      %p72 = scmp.eq.s32.totalorder %s24, 1
      %p73 = por %p71, %p72
      %p75 = scmp.ne.s32.totalorder %s58, %s74
      %p76 = scmp.eq.s32.totalorder %s24, 0
      %p77 = por %p75, %p76
      %s79 = sadd.s32 %s78, 1
      %p82 = scmp.eq.s32.totalorder %s18, 1
      %p83 = scmp.ne.s32.totalorder %s78, %s80
      %p84 = scmp.eq.s32.totalorder %s18, 0
      %p85 = por %p83, %p84
      %p86 = scmp.ne.s32.totalorder %s78, %s80
      %p87 = scmp.eq.s32.totalorder %s23, 1
      %p88 = por %p86, %p87
      %p89 = scmp.ne.s32.totalorder %s80, %s81
      %p90 = scmp.eq.s32.totalorder %s23, 0
      %p91 = por %p89, %p90
      %p92 = scmp.ne.s32.totalorder %s80, %s81
      %p93 = scmp.eq.s32.totalorder %s24, 1
      %p94 = por %p92, %p93
      %p96 = scmp.ne.s32.totalorder %s81, %s95
      %p97 = scmp.eq.s32.totalorder %s24, 0
      %p98 = por %p96, %p97
      %s100 = sadd.s32 %s99, 1
      %p103 = scmp.eq.s32.totalorder %s18, 1
      %p104 = scmp.ne.s32.totalorder %s99, %s101
      %p105 = scmp.eq.s32.totalorder %s18, 0
      %p106 = por %p104, %p105
      %p107 = scmp.ne.s32.totalorder %s99, %s101
      %p108 = scmp.eq.s32.totalorder %s23, 1
      %p109 = por %p107, %p108
      %p110 = scmp.ne.s32.totalorder %s101, %s102
      %p111 = scmp.eq.s32.totalorder %s23, 0
      %p112 = por %p110, %p111
      %p113 = scmp.ne.s32.totalorder %s101, %s102
      %p114 = scmp.eq.s32.totalorder %s24, 1
      %p115 = por %p113, %p114
      %p117 = scmp.ne.s32.totalorder %s102, %s116
      %p118 = scmp.eq.s32.totalorder %s24, 0
      %p119 = por %p117, %p118
      %s120 = ssub.s32 %s18, %s25
      %p121 = scmp.eq.s32.totalorder %s120, 0
      %s123 = sadd.s32 %s122, 1
      %s124 = scalar_select %p121, %s122, %s123
      %p127 = pneg %p121
      %p128 = scmp.eq.s32.totalorder %s18, 1
      %p129 = por %p127, %p128
      %p130 = scmp.ne.s32.totalorder %s122, %s125
      %p131 = scmp.eq.s32.totalorder %s18, 0
      %p132 = por %p130, %p131
      %p133 = scmp.ne.s32.totalorder %s122, %s125
      %p134 = scmp.eq.s32.totalorder %s23, 1
      %p135 = por %p133, %p134
      %p136 = scmp.ne.s32.totalorder %s125, %s126
      %p137 = scmp.eq.s32.totalorder %s23, 0
      %p138 = por %p136, %p137
      %p139 = scmp.ne.s32.totalorder %s125, %s126
      %p140 = scmp.eq.s32.totalorder %s24, 1
      %p141 = por %p139, %p140
      %p143 = scmp.ne.s32.totalorder %s126, %s142
      %p144 = scmp.eq.s32.totalorder %s24, 0
      %p145 = por %p143, %p144
      %s146 = ssub.s32 %s18, %s25
      %p147 = scmp.eq.s32.totalorder %s146, 0
      %s149 = sadd.s32 %s148, 1
      %s150 = scalar_select %p147, %s148, %s149
      %p153 = pneg %p147
      %p154 = scmp.eq.s32.totalorder %s18, 1
      %p155 = por %p153, %p154
      %p156 = scmp.ne.s32.totalorder %s148, %s151
      %p157 = scmp.eq.s32.totalorder %s18, 0
      %p158 = por %p156, %p157
      %p159 = scmp.ne.s32.totalorder %s148, %s151
      %p160 = scmp.eq.s32.totalorder %s23, 1
      %p161 = por %p159, %p160
      %p162 = scmp.ne.s32.totalorder %s151, %s152
      %p163 = scmp.eq.s32.totalorder %s23, 0
      %p164 = por %p162, %p163
      %p165 = scmp.ne.s32.totalorder %s151, %s152
      %p166 = scmp.eq.s32.totalorder %s24, 1
      %p167 = por %p165, %p166
      %p169 = scmp.ne.s32.totalorder %s152, %s168
      %p170 = scmp.eq.s32.totalorder %s24, 0
      %p171 = por %p169, %p170
      %p172 = scmp.le.s32.totalorder 1, %s18
      %p173 = scmp.lt.s32.totalorder %s18, 3
      %p174 = pnand %p172, %p173
      %p175 = pneg %p174
      // Predicated region
      $region9: #{tpu_custom_call.1} parent=5 // pred_check
        _
      $region10: #{tpu_custom_call.1} parent=5 // pred_check_branch
        %177 = sbr.rel (%p174) target = $region12
      $region11: #{tpu_custom_call.1} parent=5 // pred_region
        %s178 = ssub.s32 %s18, 1
        // Predicated region
        $region13: #{tpu_custom_call.1} parent=11 // pred_check
          %p179 = pneg %p91
        $region14: #{tpu_custom_call.1} parent=11 // pred_check_branch
          %181 = sbr.rel (%p179) target = $region16
        $region15: #{tpu_custom_call.1} parent=11 // pred_region
          _
        $region16: #{tpu_custom_call.1} parent=11 // pred_fallthru
          _
        // Predicated region
        $region17: #{tpu_custom_call.1} parent=11 // pred_check
          %p182 = pneg %p112
        $region18: #{tpu_custom_call.1} parent=11 // pred_check_branch
          %184 = sbr.rel (%p182) target = $region20
        $region19: #{tpu_custom_call.1} parent=11 // pred_region
          _
        $region20: #{tpu_custom_call.1} parent=11 // pred_fallthru
          _
      $region12: #{tpu_custom_call.1} parent=5 // pred_fallthru
        _
      %p185 = scmp.lt.s32.totalorder %s18, 2
      // Predicated region
      $region21: #{tpu_custom_call.1} parent=5 // pred_check
        %p186 = pneg %p185
      $region22: #{tpu_custom_call.1} parent=5 // pred_check_branch
        %188 = sbr.rel (%p186) target = $region24
      $region23: #{tpu_custom_call.1} parent=5 // pred_region
        // Predicated region
        $region25: #{tpu_custom_call.1} parent=23 // pred_check
          %p189 = pneg %p38
        $region26: #{tpu_custom_call.1} parent=23 // pred_check_branch
          %191 = sbr.rel (%p189) target = $region28
        $region27: #{tpu_custom_call.1} parent=23 // pred_region
          %s192 = sand.u32 %s28, 1
          %s193 = scalar_lea.sflag [#allocation3], %s192
          %s194 = sand.u32 %s28, 1
          %s195 = smul.addr %s194, 24
          %s196 = scalar_lea.vmem [#allocation2], %s195
          %s198 = ssub.s32 384, 384
          %199 = vsyncadd %s193, %s198
          %s200 = smul.addr %s18, 3
          %s201 = smul.addr %s200, 128
          %s202 = scalar_lea.hbm %s0, %s201
          %s203 = sshll.u32 %s196, 4
          %s204 = int_to_ptr.vmem [resolvable:$true] %s203
          %209 = dma.hbm_to_vmem [thread:$0]  %s202, 384, %s204, %s193, 128, 128, 8
        $region28: #{tpu_custom_call.1} parent=23 // pred_fallthru
          _
        // Predicated region
        $region29: #{tpu_custom_call.1} parent=23 // pred_check
          %p210 = pneg %p64
        $region30: #{tpu_custom_call.1} parent=23 // pred_check_branch
          %212 = sbr.rel (%p210) target = $region32
        $region31: #{tpu_custom_call.1} parent=23 // pred_region
          %s213 = sand.u32 %s54, 1
          %s214 = scalar_lea.sflag [#allocation5], %s213
          %s215 = sand.u32 %s54, 1
          %s216 = smul.addr %s215, 24
          %s217 = scalar_lea.vmem [#allocation4], %s216
          %s219 = ssub.s32 384, 384
          %220 = vsyncadd %s214, %s219
          %s221 = smul.addr %s18, 3
          %s222 = smul.addr %s221, 128
          %s223 = scalar_lea.hbm %s1, %s222
          %s224 = sshll.u32 %s217, 4
          %s225 = int_to_ptr.vmem [resolvable:$true] %s224
          %230 = dma.hbm_to_vmem [thread:$0]  %s223, 384, %s225, %s214, 128, 128, 8
        $region32: #{tpu_custom_call.1} parent=23 // pred_fallthru
          _
      $region24: #{tpu_custom_call.1} parent=5 // pred_fallthru
        _
      %p231 = scmp.le.s32.totalorder 1, %s18
      %p232 = scmp.lt.s32.totalorder %s18, 3
      %p233 = pnand %p231, %p232
      %p234 = pneg %p233
      // Predicated region
      $region33: #{tpu_custom_call.1} parent=5 // pred_check
        _
      $region34: #{tpu_custom_call.1} parent=5 // pred_check_branch
        %236 = sbr.rel (%p233) target = $region36
      $region35: #{tpu_custom_call.1} parent=5 // pred_region
        %s237 = ssub.s32 %s18, 1
        %s238 = sand.u32 %s31, 1
        %s239 = scalar_lea.sflag [#allocation3], %s238
        %s240 = sand.u32 %s31, 1
        %s241 = smul.addr %s240, 24
        %s242 = scalar_lea.vmem [#allocation2], %s241
        // Predicated region
        $region37: #{tpu_custom_call.1} parent=35 // pred_check
          %p243 = pneg %p44
        $region38: #{tpu_custom_call.1} parent=35 // pred_check_branch
          %245 = sbr.rel (%p243) target = $region40
        $region39: #{tpu_custom_call.1} parent=35 // pred_region
          %246 = dma.done %s239, 384
        $region40: #{tpu_custom_call.1} parent=35 // pred_fallthru
          _
        %s247 = sand.u32 %s57, 1
        %s248 = scalar_lea.sflag [#allocation5], %s247
        %s249 = sand.u32 %s57, 1
        %s250 = smul.addr %s249, 24
        %s251 = scalar_lea.vmem [#allocation4], %s250
        // Predicated region
        $region41: #{tpu_custom_call.1} parent=35 // pred_check
          %p252 = pneg %p70
        $region42: #{tpu_custom_call.1} parent=35 // pred_check_branch
          %254 = sbr.rel (%p252) target = $region44
        $region43: #{tpu_custom_call.1} parent=35 // pred_region
          %255 = dma.done %s248, 384
        $region44: #{tpu_custom_call.1} parent=35 // pred_fallthru
          _
        %s256 = sand.u32 %s31, 1
        %s257 = scalar_lea.sflag [#allocation3], %s256
        %s258 = sand.u32 %s31, 1
        %s259 = smul.addr %s258, 24
        %s260 = scalar_lea.vmem [#allocation2], %s259
        %p261 = pneg %p44
        %p262 = pneg %p41
        %s263 = sand.u32 %s57, 1
        %s264 = scalar_lea.sflag [#allocation5], %s263
        %s265 = sand.u32 %s57, 1
        %s266 = smul.addr %s265, 24
        %s267 = scalar_lea.vmem [#allocation4], %s266
        %p268 = pneg %p70
        %p269 = pneg %p67
        %p270 = pneg %p91
        %p271 = pneg %p88
        %p272 = pneg %p112
        %p273 = pneg %p109
        %p274 = pneg %p138
        %p275 = pneg %p135
        %p276 = scmp.lt.s32.totalorder %s23, 1
        %s277 = scalar_select %p276, %s23, 1
        %s278 = scalar_lea.vmem %s4, %s277
        %p279 = pneg %p164
        %p280 = pneg %p161
        %p281 = scmp.lt.s32.totalorder %s23, 1
        %s282 = scalar_select %p281, %s23, 1
        %s283 = scalar_lea.vmem %s5, %s282
        %p284 = scmp.lt.s32.totalorder %s23, 1
        %s285 = scalar_select %p284, %s23, 1
        %s286 = scalar_lea.vmem %s4, %s285
        %p287 = scmp.lt.s32.totalorder %s23, 1
        %s288 = scalar_select %p287, %s23, 1
        %s289 = scalar_lea.vmem %s5, %s288
        %v290 = vld [vmem:[%s242] sm:$0xff]
        %v291 = vld [vmem:[%s242 + $0x8] sm:$0xff]
        %v292 = vld [vmem:[%s242 + $0x10] sm:$0xff]
        %v293 = vld [vmem:[%s251] sm:$0xff]
        %v294 = vld [vmem:[%s251 + $0x8] sm:$0xff]
        %v295 = vld [vmem:[%s251 + $0x10] sm:$0xff]
        %v296 = vmul.f32 %v290, %v290
        %v297 = vmul.f32 %v291, %v291
        %v298 = vmul.f32 %v292, %v292
        %v299 = vmul.f32 %v293, %v293
        %v300 = vmul.f32 %v294, %v294
        %v301 = vmul.f32 %v295, %v295
        %v302 = vmul.f32 %v290, %v293
        %v303 = vmul.f32 %v291, %v294
        %v304 = vmul.f32 %v292, %v295
        %v305 = vld [vmem:[%s2] sm:$0xff]
        %v306 = vld [vmem:[%s2 + $0x8] sm:$0xff]
        %v307 = vld [vmem:[%s2 + $0x10] sm:$0xff]
        %v308 = vld [vmem:[%s2 + $0x18] sm:$0xff]
        %v309 = vld [vmem:[%s2 + $0x20] sm:$0xff]
        %v310 = vld [vmem:[%s2 + $0x28] sm:$0xff]
        %v311 = vld [vmem:[%s2 + $0x30] sm:$0xff]
        %v312 = vld [vmem:[%s2 + $0x38] sm:$0xff]
        %v313 = vld [vmem:[%s2 + $0x40] sm:$0xff]
        %v314 = vld [vmem:[%s2 + $0x48] sm:$0xff]
        %vm315 = vcmask 982016
        %v317 = vsel %vm315, %v305, 0
        %v320 = vsel %vm315, %v306, 0
        %v323 = vsel %vm315, %v307, 0
        %v326 = vsel %vm315, %v308, 0
        %v329 = vsel %vm315, %v309, 0
        %v332 = vsel %vm315, %v310, 0
        %v335 = vsel %vm315, %v311, 0
        %v338 = vsel %vm315, %v312, 0
        %v341 = vsel %vm315, %v313, 0
        %v344 = vsel %vm315, %v314, 0
        %346 = vmatprep.subr.mxu0 0.0
        %347 = vmatpush1.msra.mxu0 0.0
        %348 = vmatprep.subr.mxu0 0.0
        %349 = vmatpush1.msra.mxu0 %v304
        %350 = vmatprep.subr.mxu0 0.0
        %351 = vmatpush1.msra.mxu0 %v303
        %352 = vmatprep.subr.mxu0 0.0
        %353 = vmatpush1.msra.mxu0 %v302
        %354 = vmatprep.subr.mxu0 0.0
        %355 = vmatpush1.msra.mxu0 %v301
        %356 = vmatprep.subr.mxu0 0.0
        %357 = vmatpush1.msra.mxu0 %v300
        %358 = vmatprep.subr.mxu0 0.0
        %359 = vmatpush1.msra.mxu0 %v299
        %360 = vmatprep.subr.mxu0 0.0
        %361 = vmatpush1.msra.mxu0 %v298
        %362 = vmatprep.subr.mxu0 0.0
        %363 = vmatpush1.msra.mxu0 %v297
        %364 = vmatprep.subr.mxu0 0.0
        %365 = vmatpush1.msra.mxu0 %v296
        %366 = vmatprep.subr.mxu0 0.0
        %367 = vmatpush1.msra.mxu0 %v295
        %368 = vmatprep.subr.mxu0 0.0
        %369 = vmatpush1.msra.mxu0 %v294
        %370 = vmatprep.subr.mxu0 0.0
        %371 = vmatpush1.msra.mxu0 %v293
        %372 = vmatprep.subr.mxu0 0.0
        %373 = vmatpush1.msra.mxu0 %v292
        %374 = vmatprep.subr.mxu0 0.0
        %375 = vmatpush1.msra.mxu0 %v291
        %376 = vmatprep.subr.mxu0 0.0
        %377 = vmatpush1.msra.mxu0 %v290
        %378 = vmatprep.subr.mxu0 0.0
        %379 = vmatpush2.msra.mxu0 0.0
        %380 = vmatprep.subr.mxu0 0.0
        %381 = vmatpush2.msra.mxu0 0.0
        %382 = vmatprep.subr.mxu0 0.0
        %383 = vmatpush2.msra.mxu0 0.0
        %384 = vmatprep.subr.mxu0 0.0
        %385 = vmatpush2.msra.mxu0 0.0
        %386 = vmatprep.subr.mxu0 0.0
        %387 = vmatpush2.msra.mxu0 0.0
        %388 = vmatprep.subr.mxu0 0.0
        %389 = vmatpush2.msra.mxu0 0.0
        %390 = vmatprep.subr.mxu0 0.0
        %391 = vmatpush2.msra.mxu0 0.0
        %392 = vmatprep.subr.mxu0 0.0
        %393 = vmatpush2.msra.mxu0 0.0
        %394 = vmatprep.subr.mxu0 0.0
        %395 = vmatpush2.msra.mxu0 0.0
        %396 = vmatprep.subr.mxu0 0.0
        %397 = vmatpush2.msra.mxu0 0.0
        %398 = vmatprep.subr.mxu0 0.0
        %399 = vmatpush2.msra.mxu0 0.0
        %400 = vmatprep.subr.mxu0 0.0
        %401 = vmatpush2.msra.mxu0 0.0
        %402 = vmatprep.subr.mxu0 0.0
        %403 = vmatpush2.msra.mxu0 0.0
        %404 = vmatprep.subr.mxu0 0.0
        %405 = vmatpush2.msra.mxu0 0.0
        %406 = vmatprep.subr.mxu0 0.0
        %407 = vmatpush2.msra.mxu0 0.0
        %408 = vmatprep.subr.mxu0 0.0
        %409 = vmatpush2.msra.mxu0 0.0
        %410 = vmatprep.mubr.f32.mxu0 0.0
        %411 = vmatmul.mubr.f32.gmra.mxu0 %v317
        %v412 = vpop.f32.mrf.mxu0
        %v413 = vadd.f32 0.0, %v412
        %v414 = vpop.f32.mrf.mxu0
        %415 = vmatprep.mubr.f32.mxu0 0.0
        %416 = vmatmul.mubr.f32.gmra.mxu0 %v320
        %v417 = vpop.f32.mrf.mxu0
        %v418 = vadd.f32 0.0, %v417
        %v419 = vpop.f32.mrf.mxu0
        %420 = vmatprep.mubr.f32.mxu0 0.0
        %421 = vmatmul.mubr.f32.gmra.mxu0 %v323
        %v422 = vpop.f32.mrf.mxu0
        %v423 = vadd.f32 0.0, %v422
        %v424 = vpop.f32.mrf.mxu0
        %425 = vmatprep.mubr.f32.mxu0 0.0
        %426 = vmatmul.mubr.f32.gmra.mxu0 %v326
        %v427 = vpop.f32.mrf.mxu0
        %v428 = vadd.f32 0.0, %v427
        %v429 = vpop.f32.mrf.mxu0
        %430 = vmatprep.mubr.f32.mxu0 0.0
        %431 = vmatmul.mubr.f32.gmra.mxu0 %v329
        %v432 = vpop.f32.mrf.mxu0
        %v433 = vadd.f32 0.0, %v432
        %v434 = vpop.f32.mrf.mxu0
        %435 = vmatprep.mubr.f32.mxu0 0.0
        %436 = vmatmul.mubr.f32.gmra.mxu0 %v332
        %v437 = vpop.f32.mrf.mxu0
        %v438 = vadd.f32 0.0, %v437
        %v439 = vpop.f32.mrf.mxu0
        %440 = vmatprep.mubr.f32.mxu0 0.0
        %441 = vmatmul.mubr.f32.gmra.mxu0 %v335
        %v442 = vpop.f32.mrf.mxu0
        %v443 = vadd.f32 0.0, %v442
        %v444 = vpop.f32.mrf.mxu0
        %445 = vmatprep.mubr.f32.mxu0 0.0
        %446 = vmatmul.mubr.f32.gmra.mxu0 %v338
        %v447 = vpop.f32.mrf.mxu0
        %v448 = vadd.f32 0.0, %v447
        %v449 = vpop.f32.mrf.mxu0
        %450 = vmatprep.mubr.f32.mxu0 0.0
        %451 = vmatmul.mubr.f32.gmra.mxu0 %v341
        %v452 = vpop.f32.mrf.mxu0
        %v453 = vadd.f32 0.0, %v452
        %v454 = vpop.f32.mrf.mxu0
        %455 = vmatprep.mubr.f32.mxu0 0.0
        %456 = vmatmul.mubr.f32.gmra.mxu0 %v344
        %v457 = vpop.f32.mrf.mxu0
        %v458 = vadd.f32 0.0, %v457
        %v459 = vpop.f32.mrf.mxu0
        %460 = vdwg.mxu0
        %v461 = vld [vmem:[%s3] sm:$0xff]
        %v462 = vld [vmem:[%s3 + $0x8] sm:$0xff]
        %v463 = vld [vmem:[%s3 + $0x10] sm:$0xff]
        %v464 = vld [vmem:[%s3 + $0x18] sm:$0xff]
        %v465 = vld [vmem:[%s3 + $0x20] sm:$0xff]
        %v466 = vld [vmem:[%s3 + $0x28] sm:$0xff]
        %v467 = vld [vmem:[%s3 + $0x30] sm:$0xff]
        %v468 = vld [vmem:[%s3 + $0x38] sm:$0xff]
        %v469 = vld [vmem:[%s3 + $0x40] sm:$0xff]
        %vm470 = vcmask 588800
        %v472 = vsel %vm470, %v413, 0
        %v475 = vsel %vm470, %v418, 0
        %v478 = vsel %vm470, %v423, 0
        %v481 = vsel %vm470, %v428, 0
        %v484 = vsel %vm470, %v433, 0
        %v487 = vsel %vm470, %v438, 0
        %v490 = vsel %vm470, %v443, 0
        %v493 = vsel %vm470, %v448, 0
        %v496 = vsel %vm470, %v453, 0
        %v499 = vsel %vm470, %v458, 0
        %501 = vmatprep.subr.mxu0 0.0
        %502 = vmatpush1.msra.mxu0 0.0
        %503 = vmatprep.subr.mxu0 0.0
        %504 = vmatpush1.msra.mxu0 0.0
        %505 = vmatprep.subr.mxu0 0.0
        %506 = vmatpush1.msra.mxu0 0.0
        %507 = vmatprep.subr.mxu0 0.0
        %508 = vmatpush1.msra.mxu0 0.0
        %509 = vmatprep.subr.mxu0 0.0
        %510 = vmatpush1.msra.mxu0 0.0
        %511 = vmatprep.subr.mxu0 0.0
        %512 = vmatpush1.msra.mxu0 0.0
        %513 = vmatprep.subr.mxu0 0.0
        %514 = vmatpush1.msra.mxu0 0.0
        %515 = vmatprep.subr.mxu0 0.0
        %516 = vmatpush1.msra.mxu0 %v469
        %517 = vmatprep.subr.mxu0 0.0
        %518 = vmatpush1.msra.mxu0 %v468
        %519 = vmatprep.subr.mxu0 0.0
        %520 = vmatpush1.msra.mxu0 %v467
        %521 = vmatprep.subr.mxu0 0.0
        %522 = vmatpush1.msra.mxu0 %v466
        %523 = vmatprep.subr.mxu0 0.0
        %524 = vmatpush1.msra.mxu0 %v465
        %525 = vmatprep.subr.mxu0 0.0
        %526 = vmatpush1.msra.mxu0 %v464
        %527 = vmatprep.subr.mxu0 0.0
        %528 = vmatpush1.msra.mxu0 %v463
        %529 = vmatprep.subr.mxu0 0.0
        %530 = vmatpush1.msra.mxu0 %v462
        %531 = vmatprep.subr.mxu0 0.0
        %532 = vmatpush1.msra.mxu0 %v461
        %533 = vmatprep.subr.mxu0 0.0
        %534 = vmatpush2.msra.mxu0 0.0
        %535 = vmatprep.subr.mxu0 0.0
        %536 = vmatpush2.msra.mxu0 0.0
        %537 = vmatprep.subr.mxu0 0.0
        %538 = vmatpush2.msra.mxu0 0.0
        %539 = vmatprep.subr.mxu0 0.0
        %540 = vmatpush2.msra.mxu0 0.0
        %541 = vmatprep.subr.mxu0 0.0
        %542 = vmatpush2.msra.mxu0 0.0
        %543 = vmatprep.subr.mxu0 0.0
        %544 = vmatpush2.msra.mxu0 0.0
        %545 = vmatprep.subr.mxu0 0.0
        %546 = vmatpush2.msra.mxu0 0.0
        %547 = vmatprep.subr.mxu0 0.0
        %548 = vmatpush2.msra.mxu0 0.0
        %549 = vmatprep.subr.mxu0 0.0
        %550 = vmatpush2.msra.mxu0 0.0
        %551 = vmatprep.subr.mxu0 0.0
        %552 = vmatpush2.msra.mxu0 0.0
        %553 = vmatprep.subr.mxu0 0.0
        %554 = vmatpush2.msra.mxu0 0.0
        %555 = vmatprep.subr.mxu0 0.0
        %556 = vmatpush2.msra.mxu0 0.0
        %557 = vmatprep.subr.mxu0 0.0
        %558 = vmatpush2.msra.mxu0 0.0
        %559 = vmatprep.subr.mxu0 0.0
        %560 = vmatpush2.msra.mxu0 0.0
        %561 = vmatprep.subr.mxu0 0.0
        %562 = vmatpush2.msra.mxu0 0.0
        %563 = vmatprep.subr.mxu0 0.0
        %564 = vmatpush2.msra.mxu0 0.0
        %565 = vmatprep.mubr.f32.mxu0 0.0
        %566 = vmatmul.mubr.f32.gmra.mxu0 %v472
        %v567 = vpop.f32.mrf.mxu0
        %v568 = vadd.f32 0.0, %v567
        %v569 = vpop.f32.mrf.mxu0
        %570 = vmatprep.mubr.f32.mxu0 0.0
        %571 = vmatmul.mubr.f32.gmra.mxu0 %v475
        %v572 = vpop.f32.mrf.mxu0
        %v573 = vadd.f32 0.0, %v572
        %v574 = vpop.f32.mrf.mxu0
        %575 = vmatprep.mubr.f32.mxu0 0.0
        %576 = vmatmul.mubr.f32.gmra.mxu0 %v478
        %v577 = vpop.f32.mrf.mxu0
        %v578 = vadd.f32 0.0, %v577
        %v579 = vpop.f32.mrf.mxu0
        %580 = vmatprep.mubr.f32.mxu0 0.0
        %581 = vmatmul.mubr.f32.gmra.mxu0 %v481
        %v582 = vpop.f32.mrf.mxu0
        %v583 = vadd.f32 0.0, %v582
        %v584 = vpop.f32.mrf.mxu0
        %585 = vmatprep.mubr.f32.mxu0 0.0
        %586 = vmatmul.mubr.f32.gmra.mxu0 %v484
        %v587 = vpop.f32.mrf.mxu0
        %v588 = vadd.f32 0.0, %v587
        %v589 = vpop.f32.mrf.mxu0
        %590 = vmatprep.mubr.f32.mxu0 0.0
        %591 = vmatmul.mubr.f32.gmra.mxu0 %v487
        %v592 = vpop.f32.mrf.mxu0
        %v593 = vadd.f32 0.0, %v592
        %v594 = vpop.f32.mrf.mxu0
        %595 = vmatprep.mubr.f32.mxu0 0.0
        %596 = vmatmul.mubr.f32.gmra.mxu0 %v490
        %v597 = vpop.f32.mrf.mxu0
        %v598 = vadd.f32 0.0, %v597
        %v599 = vpop.f32.mrf.mxu0
        %600 = vmatprep.mubr.f32.mxu0 0.0
        %601 = vmatmul.mubr.f32.gmra.mxu0 %v493
        %v602 = vpop.f32.mrf.mxu0
        %v603 = vadd.f32 0.0, %v602
        %v604 = vpop.f32.mrf.mxu0
        %605 = vmatprep.mubr.f32.mxu0 0.0
        %606 = vmatmul.mubr.f32.gmra.mxu0 %v496
        %v607 = vpop.f32.mrf.mxu0
        %v608 = vadd.f32 0.0, %v607
        %v609 = vpop.f32.mrf.mxu0
        %610 = vmatprep.mubr.f32.mxu0 0.0
        %611 = vmatmul.mubr.f32.gmra.mxu0 %v499
        %v612 = vpop.f32.mrf.mxu0
        %v613 = vadd.f32 0.0, %v612
        %v614 = vpop.f32.mrf.mxu0
        %615 = vdwg.mxu0
        %v616 = vmul.f32 %v568, %v568
        %v617 = vmul.f32 %v573, %v573
        %v618 = vmul.f32 %v578, %v578
        %v619 = vmul.f32 %v583, %v583
        %v620 = vmul.f32 %v568, %v578
        %v621 = vmul.f32 %v573, %v583
        %v622 = vsub.f32 %v588, %v616
        %v623 = vsub.f32 %v593, %v617
        %v624 = vsub.f32 %v598, %v618
        %v625 = vsub.f32 %v603, %v619
        %v626 = vsub.f32 %v608, %v620
        %v627 = vsub.f32 %v613, %v621
        %v628 = vmax.f32 %v622, 0.0
        %v629 = vmax.f32 %v623, 0.0
        %v630 = vmax.f32 %v624, 0.0
        %v631 = vmax.f32 %v625, 0.0
        %v632 = vmul.f32 %v626, 2.0
        %v633 = vmul.f32 %v627, 2.0
        %v634 = vadd.f32 %v632, 58.5225
        %v635 = vadd.f32 %v633, 58.5225
        %v636 = vadd.f32 %v628, %v630
        %v637 = vadd.f32 %v629, %v631
        %v638 = vadd.f32 %v636, 58.5225
        %v639 = vadd.f32 %v637, 58.5225
        %v640 = vrcp.pop %v638
        %v641 = vmul.f32 %v634, %v640
        %v642 = vrcp.pop %v639
        %v643 = vmul.f32 %v635, %v642
        %v644 = vmul.f32 %v620, 2.0
        %v645 = vmul.f32 %v621, 2.0
        %v646 = vadd.f32 %v644, 6.5025
        %v647 = vadd.f32 %v645, 6.5025
        %v648 = vadd.f32 %v616, %v618
        %v649 = vadd.f32 %v617, %v619
        %v650 = vadd.f32 %v648, 6.5025
        %v651 = vadd.f32 %v649, 6.5025
        %v652 = vrcp.pop %v650
        %v653 = vmul.f32 %v646, %v652
        %v654 = vrcp.pop %v651
        %v655 = vmul.f32 %v647, %v654
        %v656 = vmul.f32 %v653, %v641
        %v657 = vmul.f32 %v655, %v643
        %v658 = vlaneseq
        %v659 = vshrl.u32 %v658, 7
        %v660 = vadd.s32 %v659, 8
        %vm661 = vcmp.lt.s32.totalorder %v659, 14
        %vm662 = vcmp.lt.s32.totalorder %v660, 14
        %v663 = vsel %vm661, %v656, 0.0
        %v664 = vsel %vm662, %v657, 0.0
        %v665 = vsel %vm661, %v641, 0.0
        %v666 = vsel %vm662, %v643, 0.0
        %vm667 = vcmask 343040
        %v668 = vsel %vm667, %v663, 0.0
        %v669 = vsel %vm667, %v664, 0.0
        %v670 = vadd.f32 %v668, %v669
        %671 = vadd.xlane.f32.xlu0 %v670
        %v672 = vpop.xlane.xlu0 %671
        %v673 = vrot.slane %v672, 4
        %v674 = vadd.f32 %v672, %v673
        %v675 = vrot.slane %v674, 2
        %v676 = vadd.f32 %v674, %v675
        %v677 = vrot.slane %v676, 1
        %v678 = vadd.f32 %v676, %v677
        %s679 = vtos %v678
        %v680 = vstv %s679
        %vm681 = vcmask 0
        %682 = vst.msk [vmem:[%s286] sm:$0x1] %vm681, %v680
        %v683 = vsel %vm667, %v665, 0.0
        %v684 = vsel %vm667, %v666, 0.0
        %v685 = vadd.f32 %v683, %v684
        %686 = vadd.xlane.f32.xlu0 %v685
        %v687 = vpop.xlane.xlu0 %686
        %v688 = vrot.slane %v687, 4
        %v689 = vadd.f32 %v687, %v688
        %v690 = vrot.slane %v689, 2
        %v691 = vadd.f32 %v689, %v690
        %v692 = vrot.slane %v691, 1
        %v693 = vadd.f32 %v691, %v692
        %s694 = vtos %v693
        %v695 = vstv %s694
        %696 = vst.msk [vmem:[%s289] sm:$0x1] %vm681, %v695
        %p697 = scmp.lt.s32.totalorder %s23, 1
        %s698 = scalar_select %p697, %s23, 1
        %s699 = scalar_lea.vmem %s4, %s698
        %p700 = scmp.lt.s32.totalorder %s23, 1
        %s701 = scalar_select %p700, %s23, 1
        %s702 = scalar_lea.vmem %s5, %s701
        // Predicated region
        $region45: #{tpu_custom_call.1} parent=35 // pred_check
          %p703 = pneg %p135
        $region46: #{tpu_custom_call.1} parent=35 // pred_check_branch
          %705 = sbr.rel (%p703) target = $region48
        $region47: #{tpu_custom_call.1} parent=35 // pred_region
          _
        $region48: #{tpu_custom_call.1} parent=35 // pred_fallthru
          _
        // Predicated region
        $region49: #{tpu_custom_call.1} parent=35 // pred_check
          %p706 = pneg %p161
        $region50: #{tpu_custom_call.1} parent=35 // pred_check_branch
          %708 = sbr.rel (%p706) target = $region52
        $region51: #{tpu_custom_call.1} parent=35 // pred_region
          _
        $region52: #{tpu_custom_call.1} parent=35 // pred_fallthru
          _
      $region36: #{tpu_custom_call.1} parent=5 // pred_fallthru
        _
      %p709 = scmp.le.s32.totalorder 2, %s18
      // Predicated region
      $region53: #{tpu_custom_call.1} parent=5 // pred_check
        %p710 = pneg %p709
      $region54: #{tpu_custom_call.1} parent=5 // pred_check_branch
        %712 = sbr.rel (%p710) target = $region56
      $region55: #{tpu_custom_call.1} parent=5 // pred_region
        %s713 = ssub.s32 %s18, 2
        // Predicated region
        $region57: #{tpu_custom_call.1} parent=55 // pred_check
          %p714 = pneg %p141
        $region58: #{tpu_custom_call.1} parent=55 // pred_check_branch
          %716 = sbr.rel (%p714) target = $region60
        $region59: #{tpu_custom_call.1} parent=55 // pred_region
          %p717 = scmp.lt.s32.totalorder %s24, 1
          %s718 = scalar_select %p717, %s24, 1
          %s719 = scalar_lea.vmem %s4, %s718
        $region60: #{tpu_custom_call.1} parent=55 // pred_fallthru
          _
        // Predicated region
        $region61: #{tpu_custom_call.1} parent=55 // pred_check
          %p720 = pneg %p167
        $region62: #{tpu_custom_call.1} parent=55 // pred_check_branch
          %722 = sbr.rel (%p720) target = $region64
        $region63: #{tpu_custom_call.1} parent=55 // pred_region
          %p723 = scmp.lt.s32.totalorder %s24, 1
          %s724 = scalar_select %p723, %s24, 1
          %s725 = scalar_lea.vmem %s5, %s724
        $region64: #{tpu_custom_call.1} parent=55 // pred_fallthru
          _
      $region56: #{tpu_custom_call.1} parent=5 // pred_fallthru
        _
    $region6: #{tpu_custom_call.1} parent=1 // loop_footer
      %s22 = sadd.s32 1, %s18
    $region7: #{tpu_custom_call.1} parent=1 // loop_footer_branch
      %17 = sbr.rel target = $region3
    $region8: #{tpu_custom_call.1} parent=1 // loop_exit
      _
    %726 = vsyncpa [#allocation3], 1
    %s727 = scalar_lea.sflag [#allocation3], 1
    %728 = vsyncpa %s727, 1
    %729 = vsyncpa [#allocation5], 1
    %s730 = scalar_lea.sflag [#allocation5], 1
    %731 = vsyncpa %s730, 1

</llo_original>
